<compile_context>
chip_gen: v7x
topology: tpu7x:2x2x1
jax: 0.10.0
libtpu: 0.0.40
codegen_flags: <defaults>
</compile_context>

<pallas_src>
import jax
import jax.numpy as jnp
from jax.experimental import pallas as pl
from jax.experimental.pallas import tpu as pltpu


def _mlp_kernel(x_ref, w1_ref, b1_ref, w2_ref, b2_ref, o_ref):
    # x_ref : (64, TB)   w1_ref: (H, 64)   b1_ref: (H, 1)
    # w2_ref: (O, H)     b2_ref: (O, 1)    o_ref : (O, TB)
    h = jnp.dot(w1_ref[...], x_ref[...], preferred_element_type=jnp.float32)
    h = jnp.maximum(h + b1_ref[...], 0.0)                      # bias-add / ReLU in f32 (VPU)
    out = jnp.dot(w2_ref[...], h, preferred_element_type=jnp.float32)
    o_ref[...] = (out + b2_ref[...]).astype(o_ref.dtype)


def _round_up(n, m):
    return ((n + m - 1) // m) * m


def simple_nn_forward(x, w1, b1, w2, b2, *, tb=512, cast_inputs_to_bf16=False):
    """x: (B, 64) f32; w1: (64, H); b1: (H,); w2: (H, O); b2: (O,).

    Weights are (in_features, out_features), i.e. the transpose of PyTorch's
    nn.Linear.weight; math matches SimpleNN.forward exactly.
    """
    B, K = x.shape
    H = w1.shape[1]
    O = w2.shape[1]

    # Lane-dense batch tile: multiple of 128, capped by (padded) batch size.
    tb = min(_round_up(tb, 128), _round_up(B, 128))
    b_pad = _round_up(B, tb)

    # Layout plumbing in the wrapper (cheap XLA ops): batch-on-lanes transpose
    # + pad the batch tail up to a whole tile. Padded rows are sliced off below.
    xt = jnp.pad(x, ((0, b_pad - B), (0, 0))).T          # (K, b_pad)
    w1t = w1.T                                           # (H, K)
    w2t = w2.T                                           # (O, H)
    b1c = b1.reshape(H, 1)
    b2c = b2.reshape(O, 1)

    if cast_inputs_to_bf16:
        # Optional: halve read-side HBM traffic; accumulation stays f32.
        xt = xt.astype(jnp.bfloat16)
        w1t = w1t.astype(jnp.bfloat16)
        w2t = w2t.astype(jnp.bfloat16)

    grid = (pl.cdiv(b_pad, tb),)

    out_t = pl.pallas_call(
        _mlp_kernel,
        out_shape=jax.ShapeDtypeStruct((O, b_pad), jnp.float32),
        grid=grid,
        in_specs=[
            pl.BlockSpec((K, tb), lambda i: (0, i)),     # streamed x^T tile
            pl.BlockSpec((H, K), lambda i: (0, 0)),      # resident w1^T
            pl.BlockSpec((H, 1), lambda i: (0, 0)),      # resident b1
            pl.BlockSpec((O, H), lambda i: (0, 0)),      # resident w2^T
            pl.BlockSpec((O, 1), lambda i: (0, 0)),      # resident b2
        ],
        out_specs=pl.BlockSpec((O, tb), lambda i: (0, i)),
        compiler_params=pltpu.CompilerParams(
            dimension_semantics=("parallel",),           # megacore on v7x
        ),
    )(xt, w1t, b1c, w2t, b2c)

    # Back to the module's (B, O) layout, dropping batch padding.
    return out_t[:, :B].T


def init_params(key, in_features=64, hidden_neurons=8, output_neurons=10):
    """Deterministic init mimicking PyTorch nn.Linear default U[-1/sqrt(fan_in), 1/sqrt(fan_in)]."""
    k1, k2, k3, k4 = jax.random.split(key, 4)
    bound1 = 1.0 / jnp.sqrt(in_features)
    bound2 = 1.0 / jnp.sqrt(hidden_neurons)
    w1 = jax.random.uniform(k1, (in_features, hidden_neurons), jnp.float32, -bound1, bound1)
    b1 = jax.random.uniform(k2, (hidden_neurons,), jnp.float32, -bound1, bound1)
    w2 = jax.random.uniform(k3, (hidden_neurons, output_neurons), jnp.float32, -bound2, bound2)
    b2 = jax.random.uniform(k4, (output_neurons,), jnp.float32, -bound2, bound2)
    return w1, b1, w2, b2


if __name__ == "__main__":
    key = jax.random.PRNGKey(0)
    kx, kp = jax.random.split(key)

    # Small demo batch; 600 is deliberately NOT a multiple of the tile so the
    # padded-tail path is exercised (grid of 2 steps with TB=512).
    batch = 600
    x = jax.random.normal(kx, (batch, 64), dtype=jnp.float32)
    w1, b1, w2, b2 = init_params(kp)

    out = simple_nn_forward(x, w1, b1, w2, b2)
    out = jax.block_until_ready(out)

    # Reference check in plain JAX (same math as the PyTorch forward).
    ref = jnp.maximum(x @ w1 + b1, 0.0) @ w2 + b2
    assert out.shape == (batch, 10)
    assert jnp.allclose(out, ref, atol=1e-4, rtol=1e-4)

    print("KERNEL_OK")
</pallas_src>

<mosaic_0001>
module attributes {stable_mosaic.version = 11 : i64} {
  func.func @_mlp_kernel(%arg0: i32, %arg1: memref<64x512xf32, #tpu.memory_space<vmem>>, %arg2: memref<8x64xf32, #tpu.memory_space<vmem>>, %arg3: memref<8x1xf32, #tpu.memory_space<vmem>>, %arg4: memref<10x8xf32, #tpu.memory_space<vmem>>, %arg5: memref<10x1xf32, #tpu.memory_space<vmem>>, %arg6: memref<10x512xf32, #tpu.memory_space<vmem>>) attributes {dimension_semantics = [#tpu.dimension_semantics<parallel>], iteration_bounds = array<i64: 2>, scalar_prefetch = 0 : i64, scratch_operands = 0 : i64, tpu.core_type = #tpu.core_type<tc>, window_params = [{transform_indices = @transform_0, window_bounds = array<i64: 64, 512>}, {pipeline_mode = #tpu.pipeline_mode<synchronous>, transform_indices = @transform_1, window_bounds = array<i64: 8, 64>}, {pipeline_mode = #tpu.pipeline_mode<synchronous>, transform_indices = @transform_2, window_bounds = array<i64: 8, 1>}, {pipeline_mode = #tpu.pipeline_mode<synchronous>, transform_indices = @transform_3, window_bounds = array<i64: 10, 8>}, {pipeline_mode = #tpu.pipeline_mode<synchronous>, transform_indices = @transform_4, window_bounds = array<i64: 10, 1>}, {transform_indices = @transform_5, window_bounds = array<i64: 10, 512>}]} {
    %c0 = arith.constant 0 : index
    %c0_0 = arith.constant 0 : index
    %0 = vector.load %arg2[%c0, %c0_0] : memref<8x64xf32, #tpu.memory_space<vmem>>, vector<8x64xf32>
    %c0_1 = arith.constant 0 : index
    %c0_2 = arith.constant 0 : index
    %1 = vector.load %arg1[%c0_1, %c0_2] : memref<64x512xf32, #tpu.memory_space<vmem>>, vector<64x512xf32>
    %cst = arith.constant dense<0.000000e+00> : vector<8x512xf32>
    %2 = tpu.matmul %0, %1, %cst {dimension_numbers = #tpu.dot_dimension_numbers<[1], [0], [0], [1], [0, 0, 1, 1], [], []>} : vector<8x64xf32>, vector<64x512xf32>, vector<8x512xf32> -> vector<8x512xf32>
    %c0_3 = arith.constant 0 : index
    %c0_4 = arith.constant 0 : index
    %3 = vector.load %arg3[%c0_3, %c0_4] : memref<8x1xf32, #tpu.memory_space<vmem>>, vector<8x1xf32>
    %4 = vector.broadcast %3 : vector<8x1xf32> to vector<8x512xf32>
    %5 = arith.addf %2, %4 : vector<8x512xf32>
    %cst_5 = arith.constant 0.000000e+00 : f32
    %6 = vector.broadcast %cst_5 : f32 to vector<8x512xf32>
    %7 = arith.maximumf %5, %6 : vector<8x512xf32>
    %c0_6 = arith.constant 0 : index
    %c0_7 = arith.constant 0 : index
    %8 = vector.load %arg4[%c0_6, %c0_7] : memref<10x8xf32, #tpu.memory_space<vmem>>, vector<10x8xf32>
    %cst_8 = arith.constant dense<0.000000e+00> : vector<10x512xf32>
    %9 = tpu.matmul %8, %7, %cst_8 {dimension_numbers = #tpu.dot_dimension_numbers<[1], [0], [0], [1], [0, 0, 1, 1], [], []>} : vector<10x8xf32>, vector<8x512xf32>, vector<10x512xf32> -> vector<10x512xf32>
    %c0_9 = arith.constant 0 : index
    %c0_10 = arith.constant 0 : index
    %10 = vector.load %arg5[%c0_9, %c0_10] : memref<10x1xf32, #tpu.memory_space<vmem>>, vector<10x1xf32>
    %11 = vector.broadcast %10 : vector<10x1xf32> to vector<10x512xf32>
    %12 = arith.addf %9, %11 : vector<10x512xf32>
    %c0_11 = arith.constant 0 : index
    %c0_12 = arith.constant 0 : index
    %13 = vector.load %arg6[%c0_11, %c0_12] : memref<10x512xf32, #tpu.memory_space<vmem>>, vector<10x512xf32>
    tpu.vector_store %arg6[%c0_11, %c0_12], %12 {strides = array<i32>} : memref<10x512xf32, #tpu.memory_space<vmem>>, vector<10x512xf32>,
    return
  }
  func.func @transform_0(%arg0: i32) -> (i32, i32) {
    %c0_i32 = arith.constant 0 : i32
    %c0_i32_0 = arith.constant 0 : i32
    return %c0_i32, %arg0 : i32, i32
  }
  func.func @transform_1(%arg0: i32) -> (i32, i32) {
    %c0_i32 = arith.constant 0 : i32
    %c0_i32_0 = arith.constant 0 : i32
    %c0_i32_1 = arith.constant 0 : i32
    return %c0_i32, %c0_i32_0 : i32, i32
  }
  func.func @transform_2(%arg0: i32) -> (i32, i32) {
    %c0_i32 = arith.constant 0 : i32
    %c0_i32_0 = arith.constant 0 : i32
    %c0_i32_1 = arith.constant 0 : i32
    return %c0_i32, %c0_i32_0 : i32, i32
  }
  func.func @transform_3(%arg0: i32) -> (i32, i32) {
    %c0_i32 = arith.constant 0 : i32
    %c0_i32_0 = arith.constant 0 : i32
    %c0_i32_1 = arith.constant 0 : i32
    return %c0_i32, %c0_i32_0 : i32, i32
  }
  func.func @transform_4(%arg0: i32) -> (i32, i32) {
    %c0_i32 = arith.constant 0 : i32
    %c0_i32_0 = arith.constant 0 : i32
    %c0_i32_1 = arith.constant 0 : i32
    return %c0_i32, %c0_i32_0 : i32, i32
  }
  func.func @transform_5(%arg0: i32) -> (i32, i32) {
    %c0_i32 = arith.constant 0 : i32
    %c0_i32_0 = arith.constant 0 : i32
    return %c0_i32, %arg0 : i32, i32
  }
}

</mosaic_0001>

<llo_original>
// kernel: tpu_custom_call.1
$region0: #{tpu_custom_call.1}
  #allocation0 [shape = 'u32[]', space=smem, size = 0x4, offset = 0x4, fixed_abs, tag = 'smem constant byte address 0x4 - core index']
  #allocation1 [shape = 'u32[144,128]{1,0:T(1,128)}', space=vmem, size = 0x12000, scoped, tag = 'internal scratch']
  %s0 = inlined_call_operand.hbm [shape: f32[64,1024], index: 0, kind: input, shape index: {}]
  %s1 = inlined_call_operand.vmem [shape: f32[8,64], index: 1, kind: input, shape index: {}]
  %s2 = inlined_call_operand.vmem [shape: f32[8,1], index: 2, kind: input, shape index: {}]
  %s3 = inlined_call_operand.vmem [shape: f32[10,8], index: 3, kind: input, shape index: {}]
  %s4 = inlined_call_operand.vmem [shape: f32[10,1], index: 4, kind: input, shape index: {}]
  %s5 = inlined_call_operand.hbm [shape: f32[10,1024], index: 5, kind: output, shape index: {}]
  %s6 = sld [smem:[#allocation0]]
  $region57: #{tpu_custom_call.1} parent=0
    _
  %s8 = ssub.s32 1, %s6
  %s9 = scalar_select 0, %s8, %s6
  $region1: #{tpu_custom_call.1} parent=0
    #allocation2 [shape = 'u8[262144]{0}', space=vmem, size = 0x40000, scoped, tag = 'input window, operand 0']
    #allocation3 [shape = 's32[2]{0}', space=sflag, size = 0x8, scoped, tag = 'scoped memory for tpu_custom_call.1']
    #allocation4 [shape = 's32[2]{0}', space=sflag, size = 0x8, scoped, tag = 'scoped memory for tpu_custom_call.1']
    #allocation5 [shape = 'u8[65536]{0}', space=vmem, size = 0x10000, scoped, tag = 'output window, operand 0']
    %10 = vsyncpa [#allocation3], 0
    %s11 = scalar_lea.sflag [#allocation3], 1
    %12 = vsyncpa %s11, 0
    %13 = vsyncpa [#allocation4], 0
    %s14 = scalar_lea.sflag [#allocation4], 1
    %15 = vsyncpa %s14, 0
    loop: start=0, step=1, limit=4
    $region2: #{tpu_custom_call.1} parent=1 // loop_pre_header
      _
    $region3: #{tpu_custom_call.1} parent=1 // loop_header
      %s17 = sphi 0, %s21
      %p18 = scmp.ge.s32.totalorder %s17, 4
      %s27 = sphi 0, %s29
      %s30 = sphi 0, %s27
      %s31 = sphi 0, %s30
      %s47 = sphi 0, %s31
      %s51 = sphi 0, %s51
      %s53 = sphi 0, %s51
      %s54 = sphi 0, %s53
      %s68 = sphi 0, %s54
      %s72 = sphi 0, %s72
      %s74 = sphi 0, %s72
      %s75 = sphi 0, %s74
      %s89 = sphi 0, %s75
      %s93 = sphi 0, %s93
      %s95 = sphi 0, %s93
      %s96 = sphi 0, %s95
      %s110 = sphi 0, %s96
      %s114 = sphi 0, %s114
      %s116 = sphi 0, %s114
      %s117 = sphi 0, %s116
      %s131 = sphi 0, %s117
      %s137 = sphi 0, %s139
      %s140 = sphi 0, %s137
      %s141 = sphi 0, %s140
      %s157 = sphi 0, %s141
    $region4: #{tpu_custom_call.1} parent=1 // loop_header_branch
      %20 = sbr.rel (%p18) target = $region8
    $region5: #{tpu_custom_call.1} parent=1 // loop_body
      %s22 = ssub.s32 %s17, 1
      %s23 = ssub.s32 %s17, 2
      %s24 = sadd.s32 %s17, 1
      %s25 = ssub.s32 %s17, %s24
      %p26 = scmp.eq.s32.totalorder %s25, 0
      %s28 = sadd.s32 %s27, 1
      %s29 = scalar_select %p26, %s27, %s28
      %p32 = pneg %p26
      %p33 = scmp.eq.s32.totalorder %s17, 1
      %p34 = por %p32, %p33
      %p35 = scmp.ne.s32.totalorder %s27, %s30
      %p36 = scmp.eq.s32.totalorder %s17, 0
      %p37 = por %p35, %p36
      %p38 = scmp.ne.s32.totalorder %s27, %s30
      %p39 = scmp.eq.s32.totalorder %s22, 1
      %p40 = por %p38, %p39
      %p41 = scmp.ne.s32.totalorder %s30, %s31
      %p42 = scmp.eq.s32.totalorder %s22, 0
      %p43 = por %p41, %p42
      %p44 = scmp.ne.s32.totalorder %s30, %s31
      %p45 = scmp.eq.s32.totalorder %s23, 1
      %p46 = por %p44, %p45
      %p48 = scmp.ne.s32.totalorder %s31, %s47
      %p49 = scmp.eq.s32.totalorder %s23, 0
      %p50 = por %p48, %p49
      %s52 = sadd.s32 %s51, 1
      %p55 = scmp.eq.s32.totalorder %s17, 1
      %p56 = scmp.ne.s32.totalorder %s51, %s53
      %p57 = scmp.eq.s32.totalorder %s17, 0
      %p58 = por %p56, %p57
      %p59 = scmp.ne.s32.totalorder %s51, %s53
      %p60 = scmp.eq.s32.totalorder %s22, 1
      %p61 = por %p59, %p60
      %p62 = scmp.ne.s32.totalorder %s53, %s54
      %p63 = scmp.eq.s32.totalorder %s22, 0
      %p64 = por %p62, %p63
      %p65 = scmp.ne.s32.totalorder %s53, %s54
      %p66 = scmp.eq.s32.totalorder %s23, 1
      %p67 = por %p65, %p66
      %p69 = scmp.ne.s32.totalorder %s54, %s68
      %p70 = scmp.eq.s32.totalorder %s23, 0
      %p71 = por %p69, %p70
      %s73 = sadd.s32 %s72, 1
      %p76 = scmp.eq.s32.totalorder %s17, 1
      %p77 = scmp.ne.s32.totalorder %s72, %s74
      %p78 = scmp.eq.s32.totalorder %s17, 0
      %p79 = por %p77, %p78
      %p80 = scmp.ne.s32.totalorder %s72, %s74
      %p81 = scmp.eq.s32.totalorder %s22, 1
      %p82 = por %p80, %p81
      %p83 = scmp.ne.s32.totalorder %s74, %s75
      %p84 = scmp.eq.s32.totalorder %s22, 0
      %p85 = por %p83, %p84
      %p86 = scmp.ne.s32.totalorder %s74, %s75
      %p87 = scmp.eq.s32.totalorder %s23, 1
      %p88 = por %p86, %p87
      %p90 = scmp.ne.s32.totalorder %s75, %s89
      %p91 = scmp.eq.s32.totalorder %s23, 0
      %p92 = por %p90, %p91
      %s94 = sadd.s32 %s93, 1
      %p97 = scmp.eq.s32.totalorder %s17, 1
      %p98 = scmp.ne.s32.totalorder %s93, %s95
      %p99 = scmp.eq.s32.totalorder %s17, 0
      %p100 = por %p98, %p99
      %p101 = scmp.ne.s32.totalorder %s93, %s95
      %p102 = scmp.eq.s32.totalorder %s22, 1
      %p103 = por %p101, %p102
      %p104 = scmp.ne.s32.totalorder %s95, %s96
      %p105 = scmp.eq.s32.totalorder %s22, 0
      %p106 = por %p104, %p105
      %p107 = scmp.ne.s32.totalorder %s95, %s96
      %p108 = scmp.eq.s32.totalorder %s23, 1
      %p109 = por %p107, %p108
      %p111 = scmp.ne.s32.totalorder %s96, %s110
      %p112 = scmp.eq.s32.totalorder %s23, 0
      %p113 = por %p111, %p112
      %s115 = sadd.s32 %s114, 1
      %p118 = scmp.eq.s32.totalorder %s17, 1
      %p119 = scmp.ne.s32.totalorder %s114, %s116
      %p120 = scmp.eq.s32.totalorder %s17, 0
      %p121 = por %p119, %p120
      %p122 = scmp.ne.s32.totalorder %s114, %s116
      %p123 = scmp.eq.s32.totalorder %s22, 1
      %p124 = por %p122, %p123
      %p125 = scmp.ne.s32.totalorder %s116, %s117
      %p126 = scmp.eq.s32.totalorder %s22, 0
      %p127 = por %p125, %p126
      %p128 = scmp.ne.s32.totalorder %s116, %s117
      %p129 = scmp.eq.s32.totalorder %s23, 1
      %p130 = por %p128, %p129
      %p132 = scmp.ne.s32.totalorder %s117, %s131
      %p133 = scmp.eq.s32.totalorder %s23, 0
      %p134 = por %p132, %p133
      %s135 = ssub.s32 %s17, %s24
      %p136 = scmp.eq.s32.totalorder %s135, 0
      %s138 = sadd.s32 %s137, 1
      %s139 = scalar_select %p136, %s137, %s138
      %p142 = pneg %p136
      %p143 = scmp.eq.s32.totalorder %s17, 1
      %p144 = por %p142, %p143
      %p145 = scmp.ne.s32.totalorder %s137, %s140
      %p146 = scmp.eq.s32.totalorder %s17, 0
      %p147 = por %p145, %p146
      %p148 = scmp.ne.s32.totalorder %s137, %s140
      %p149 = scmp.eq.s32.totalorder %s22, 1
      %p150 = por %p148, %p149
      %p151 = scmp.ne.s32.totalorder %s140, %s141
      %p152 = scmp.eq.s32.totalorder %s22, 0
      %p153 = por %p151, %p152
      %p154 = scmp.ne.s32.totalorder %s140, %s141
      %p155 = scmp.eq.s32.totalorder %s23, 1
      %p156 = por %p154, %p155
      %p158 = scmp.ne.s32.totalorder %s141, %s157
      %p159 = scmp.eq.s32.totalorder %s23, 0
      %p160 = por %p158, %p159
      %p161 = scmp.le.s32.totalorder 1, %s17
      %p162 = scmp.lt.s32.totalorder %s17, 3
      %p163 = pnand %p161, %p162
      %p164 = pneg %p163
      // Predicated region
      $region9: #{tpu_custom_call.1} parent=5 // pred_check
        _
      $region10: #{tpu_custom_call.1} parent=5 // pred_check_branch
        %166 = sbr.rel (%p163) target = $region12
      $region11: #{tpu_custom_call.1} parent=5 // pred_region
        %s167 = ssub.s32 %s17, 1
        // Predicated region
        $region13: #{tpu_custom_call.1} parent=11 // pred_check
          %p168 = pneg %p64
        $region14: #{tpu_custom_call.1} parent=11 // pred_check_branch
          %170 = sbr.rel (%p168) target = $region16
        $region15: #{tpu_custom_call.1} parent=11 // pred_region
          _
        $region16: #{tpu_custom_call.1} parent=11 // pred_fallthru
          _
        // Predicated region
        $region17: #{tpu_custom_call.1} parent=11 // pred_check
          %p171 = pneg %p85
        $region18: #{tpu_custom_call.1} parent=11 // pred_check_branch
          %173 = sbr.rel (%p171) target = $region20
        $region19: #{tpu_custom_call.1} parent=11 // pred_region
          _
        $region20: #{tpu_custom_call.1} parent=11 // pred_fallthru
          _
        // Predicated region
        $region21: #{tpu_custom_call.1} parent=11 // pred_check
          %p174 = pneg %p106
        $region22: #{tpu_custom_call.1} parent=11 // pred_check_branch
          %176 = sbr.rel (%p174) target = $region24
        $region23: #{tpu_custom_call.1} parent=11 // pred_region
          _
        $region24: #{tpu_custom_call.1} parent=11 // pred_fallthru
          _
        // Predicated region
        $region25: #{tpu_custom_call.1} parent=11 // pred_check
          %p177 = pneg %p127
        $region26: #{tpu_custom_call.1} parent=11 // pred_check_branch
          %179 = sbr.rel (%p177) target = $region28
        $region27: #{tpu_custom_call.1} parent=11 // pred_region
          _
        $region28: #{tpu_custom_call.1} parent=11 // pred_fallthru
          _
      $region12: #{tpu_custom_call.1} parent=5 // pred_fallthru
        _
      %p180 = scmp.lt.s32.totalorder %s17, 2
      // Predicated region
      $region29: #{tpu_custom_call.1} parent=5 // pred_check
        %p181 = pneg %p180
      $region30: #{tpu_custom_call.1} parent=5 // pred_check_branch
        %183 = sbr.rel (%p181) target = $region32
      $region31: #{tpu_custom_call.1} parent=5 // pred_region
        // Predicated region
        $region33: #{tpu_custom_call.1} parent=31 // pred_check
          %p184 = pneg %p37
        $region34: #{tpu_custom_call.1} parent=31 // pred_check_branch
          %186 = sbr.rel (%p184) target = $region36
        $region35: #{tpu_custom_call.1} parent=31 // pred_region
          %s187 = sand.u32 %s27, 1
          %s188 = scalar_lea.sflag [#allocation3], %s187
          %s189 = sand.u32 %s27, 1
          %s190 = smul.addr %s189, 256
          %s191 = scalar_lea.vmem [#allocation2], %s190
          %s192 = smul.u32 4, %s17
          %s194 = ssub.s32 4096, 4096
          %195 = vsyncadd %s188, %s194
          %s196 = smul.addr %s192, 128
          %s197 = scalar_lea.hbm %s0, %s196
          %s198 = sshll.u32 %s191, 4
          %s199 = int_to_ptr.vmem [resolvable:$true] %s198
          %204 = dma.hbm_to_vmem [thread:$0]  %s197, 4096, %s199, %s188, 1024, 512, 32
        $region36: #{tpu_custom_call.1} parent=31 // pred_fallthru
          _
      $region32: #{tpu_custom_call.1} parent=5 // pred_fallthru
        _
      %p205 = scmp.le.s32.totalorder 1, %s17
      %p206 = scmp.lt.s32.totalorder %s17, 3
      %p207 = pnand %p205, %p206
      %p208 = pneg %p207
      // Predicated region
      $region37: #{tpu_custom_call.1} parent=5 // pred_check
        _
      $region38: #{tpu_custom_call.1} parent=5 // pred_check_branch
        %210 = sbr.rel (%p207) target = $region40
      $region39: #{tpu_custom_call.1} parent=5 // pred_region
        %s211 = ssub.s32 %s17, 1
        %s212 = sand.u32 %s30, 1
        %s213 = scalar_lea.sflag [#allocation3], %s212
        %s214 = sand.u32 %s30, 1
        %s215 = smul.addr %s214, 256
        %s216 = scalar_lea.vmem [#allocation2], %s215
        // Predicated region
        $region41: #{tpu_custom_call.1} parent=39 // pred_check
          %p217 = pneg %p43
        $region42: #{tpu_custom_call.1} parent=39 // pred_check_branch
          %219 = sbr.rel (%p217) target = $region44
        $region43: #{tpu_custom_call.1} parent=39 // pred_region
          %220 = dma.done %s213, 4096
        $region44: #{tpu_custom_call.1} parent=39 // pred_fallthru
          _
        %s221 = sand.u32 %s30, 1
        %s222 = scalar_lea.sflag [#allocation3], %s221
        %s223 = sand.u32 %s30, 1
        %s224 = smul.addr %s223, 256
        %s225 = scalar_lea.vmem [#allocation2], %s224
        %p226 = pneg %p43
        %p227 = pneg %p40
        %p228 = pneg %p64
        %p229 = pneg %p61
        %p230 = pneg %p85
        %p231 = pneg %p82
        %p232 = pneg %p106
        %p233 = pneg %p103
        %p234 = pneg %p127
        %p235 = pneg %p124
        %p236 = pneg %p153
        %p237 = pneg %p150
        %s238 = sand.u32 %s140, 1
        %s239 = scalar_lea.sflag [#allocation4], %s238
        %s240 = sand.u32 %s140, 1
        %s241 = smul.addr %s240, 64
        %s242 = scalar_lea.vmem [#allocation5], %s241
        %s243 = smul.u32 4, %s22
        %s244 = smul.u32 4, %s22
        %v245 = vld [vmem:[%s1] sm:$0xff]
        %v246 = vld [vmem:[%s216] sm:$0xff]
        %v247 = vld [vmem:[%s216 + $0x8] sm:$0xff]
        %v248 = vld [vmem:[%s216 + $0x10] sm:$0xff]
        %v249 = vld [vmem:[%s216 + $0x18] sm:$0xff]
        %v250 = vld [vmem:[%s216 + $0x20] sm:$0xff]
        %v251 = vld [vmem:[%s216 + $0x28] sm:$0xff]
        %v252 = vld [vmem:[%s216 + $0x30] sm:$0xff]
        %v253 = vld [vmem:[%s216 + $0x38] sm:$0xff]
        %v254 = vld [vmem:[%s216 + $0x40] sm:$0xff]
        %v255 = vld [vmem:[%s216 + $0x48] sm:$0xff]
        %v256 = vld [vmem:[%s216 + $0x50] sm:$0xff]
        %v257 = vld [vmem:[%s216 + $0x58] sm:$0xff]
        %v258 = vld [vmem:[%s216 + $0x60] sm:$0xff]
        %v259 = vld [vmem:[%s216 + $0x68] sm:$0xff]
        %v260 = vld [vmem:[%s216 + $0x70] sm:$0xff]
        %v261 = vld [vmem:[%s216 + $0x78] sm:$0xff]
        %v262 = vld [vmem:[%s216 + $0x80] sm:$0xff]
        %v263 = vld [vmem:[%s216 + $0x88] sm:$0xff]
        %v264 = vld [vmem:[%s216 + $0x90] sm:$0xff]
        %v265 = vld [vmem:[%s216 + $0x98] sm:$0xff]
        %v266 = vld [vmem:[%s216 + $0xa0] sm:$0xff]
        %v267 = vld [vmem:[%s216 + $0xa8] sm:$0xff]
        %v268 = vld [vmem:[%s216 + $0xb0] sm:$0xff]
        %v269 = vld [vmem:[%s216 + $0xb8] sm:$0xff]
        %v270 = vld [vmem:[%s216 + $0xc0] sm:$0xff]
        %v271 = vld [vmem:[%s216 + $0xc8] sm:$0xff]
        %v272 = vld [vmem:[%s216 + $0xd0] sm:$0xff]
        %v273 = vld [vmem:[%s216 + $0xd8] sm:$0xff]
        %v274 = vld [vmem:[%s216 + $0xe0] sm:$0xff]
        %v275 = vld [vmem:[%s216 + $0xe8] sm:$0xff]
        %v276 = vld [vmem:[%s216 + $0xf0] sm:$0xff]
        %v277 = vld [vmem:[%s216 + $0xf8] sm:$0xff]
        %v278 = vld [vmem:[%s2] sm:$0xff]
        %280 = vset.pattern.permute.xlu0 0
        %281 = vperm.xlu0 %280, %v278
        %v282 = vpop.permute.xlu0 %281
        %vm284 = vcmask 523264
        %v286 = vsel %vm284, %v245, 0
        %288 = vmatprep.subr.mxu0 %v247
        %289 = vmatpush1.msra.mxu0 %v246
        %290 = vmatprep.subr.mxu0 %v251
        %291 = vmatpush1.msra.mxu0 %v250
        %292 = vmatprep.subr.mxu0 %v255
        %293 = vmatpush1.msra.mxu0 %v254
        %294 = vmatprep.subr.mxu0 %v259
        %295 = vmatpush1.msra.mxu0 %v258
        %296 = vmatprep.subr.mxu0 %v263
        %297 = vmatpush1.msra.mxu0 %v262
        %298 = vmatprep.subr.mxu0 %v267
        %299 = vmatpush1.msra.mxu0 %v266
        %300 = vmatprep.subr.mxu0 %v271
        %301 = vmatpush1.msra.mxu0 %v270
        %302 = vmatprep.subr.mxu0 %v275
        %303 = vmatpush1.msra.mxu0 %v274
        %304 = vmatprep.subr.mxu0 0.0
        %305 = vmatpush1.msra.mxu0 0.0
        %306 = vmatprep.subr.mxu0 0.0
        %307 = vmatpush1.msra.mxu0 0.0
        %308 = vmatprep.subr.mxu0 0.0
        %309 = vmatpush1.msra.mxu0 0.0
        %310 = vmatprep.subr.mxu0 0.0
        %311 = vmatpush1.msra.mxu0 0.0
        %312 = vmatprep.subr.mxu0 0.0
        %313 = vmatpush1.msra.mxu0 0.0
        %314 = vmatprep.subr.mxu0 0.0
        %315 = vmatpush1.msra.mxu0 0.0
        %316 = vmatprep.subr.mxu0 0.0
        %317 = vmatpush1.msra.mxu0 0.0
        %318 = vmatprep.subr.mxu0 0.0
        %319 = vmatpush1.msra.mxu0 0.0
        %320 = vmatprep.subr.mxu0 0.0
        %321 = vmatpush1.msra.mxu0 0.0
        %322 = vmatprep.subr.mxu0 0.0
        %323 = vmatpush1.msra.mxu0 0.0
        %324 = vmatprep.subr.mxu0 0.0
        %325 = vmatpush1.msra.mxu0 0.0
        %326 = vmatprep.subr.mxu0 0.0
        %327 = vmatpush1.msra.mxu0 0.0
        %328 = vmatprep.subr.mxu0 0.0
        %329 = vmatpush1.msra.mxu0 0.0
        %330 = vmatprep.subr.mxu0 0.0
        %331 = vmatpush1.msra.mxu0 0.0
        %332 = vmatprep.subr.mxu0 0.0
        %333 = vmatpush1.msra.mxu0 0.0
        %334 = vmatprep.subr.mxu0 0.0
        %335 = vmatpush1.msra.mxu0 0.0
        %336 = vmatprep.subr.mxu0 0.0
        %337 = vmatpush1.msra.mxu0 0.0
        %338 = vmatprep.subr.mxu0 0.0
        %339 = vmatpush1.msra.mxu0 0.0
        %340 = vmatprep.subr.mxu0 0.0
        %341 = vmatpush1.msra.mxu0 0.0
        %342 = vmatprep.subr.mxu0 0.0
        %343 = vmatpush1.msra.mxu0 0.0
        %344 = vmatprep.subr.mxu0 0.0
        %345 = vmatpush1.msra.mxu0 0.0
        %346 = vmatprep.subr.mxu0 0.0
        %347 = vmatpush1.msra.mxu0 0.0
        %348 = vmatprep.subr.mxu0 0.0
        %349 = vmatpush1.msra.mxu0 0.0
        %350 = vmatprep.subr.mxu0 0.0
        %351 = vmatpush1.msra.mxu0 0.0
        %352 = vmatprep.mubr.f32.mxu0 0.0
        %353 = vmatmul.mubr.f32.gmra.mrb[0].mxu0 %v286
        %v354 = vpop.f32.mrb[0].mxu0
        %v355 = vadd.f32 %v282, %v354
        %v356 = vpop.f32.mrb[0].mxu0
        %v357 = vadd.f32 %v282, %v356
        %358 = vdwg.mxu0
        %359 = vmatprep.subr.mxu0 %v249
        %360 = vmatpush1.msra.mxu0 %v248
        %361 = vmatprep.subr.mxu0 %v253
        %362 = vmatpush1.msra.mxu0 %v252
        %363 = vmatprep.subr.mxu0 %v257
        %364 = vmatpush1.msra.mxu0 %v256
        %365 = vmatprep.subr.mxu0 %v261
        %366 = vmatpush1.msra.mxu0 %v260
        %367 = vmatprep.subr.mxu0 %v265
        %368 = vmatpush1.msra.mxu0 %v264
        %369 = vmatprep.subr.mxu0 %v269
        %370 = vmatpush1.msra.mxu0 %v268
        %371 = vmatprep.subr.mxu0 %v273
        %372 = vmatpush1.msra.mxu0 %v272
        %373 = vmatprep.subr.mxu0 %v277
        %374 = vmatpush1.msra.mxu0 %v276
        %375 = vmatprep.subr.mxu0 0.0
        %376 = vmatpush1.msra.mxu0 0.0
        %377 = vmatprep.subr.mxu0 0.0
        %378 = vmatpush1.msra.mxu0 0.0
        %379 = vmatprep.subr.mxu0 0.0
        %380 = vmatpush1.msra.mxu0 0.0
        %381 = vmatprep.subr.mxu0 0.0
        %382 = vmatpush1.msra.mxu0 0.0
        %383 = vmatprep.subr.mxu0 0.0
        %384 = vmatpush1.msra.mxu0 0.0
        %385 = vmatprep.subr.mxu0 0.0
        %386 = vmatpush1.msra.mxu0 0.0
        %387 = vmatprep.subr.mxu0 0.0
        %388 = vmatpush1.msra.mxu0 0.0
        %389 = vmatprep.subr.mxu0 0.0
        %390 = vmatpush1.msra.mxu0 0.0
        %391 = vmatprep.subr.mxu0 0.0
        %392 = vmatpush1.msra.mxu0 0.0
        %393 = vmatprep.subr.mxu0 0.0
        %394 = vmatpush1.msra.mxu0 0.0
        %395 = vmatprep.subr.mxu0 0.0
        %396 = vmatpush1.msra.mxu0 0.0
        %397 = vmatprep.subr.mxu0 0.0
        %398 = vmatpush1.msra.mxu0 0.0
        %399 = vmatprep.subr.mxu0 0.0
        %400 = vmatpush1.msra.mxu0 0.0
        %401 = vmatprep.subr.mxu0 0.0
        %402 = vmatpush1.msra.mxu0 0.0
        %403 = vmatprep.subr.mxu0 0.0
        %404 = vmatpush1.msra.mxu0 0.0
        %405 = vmatprep.subr.mxu0 0.0
        %406 = vmatpush1.msra.mxu0 0.0
        %407 = vmatprep.subr.mxu0 0.0
        %408 = vmatpush1.msra.mxu0 0.0
        %409 = vmatprep.subr.mxu0 0.0
        %410 = vmatpush1.msra.mxu0 0.0
        %411 = vmatprep.subr.mxu0 0.0
        %412 = vmatpush1.msra.mxu0 0.0
        %413 = vmatprep.subr.mxu0 0.0
        %414 = vmatpush1.msra.mxu0 0.0
        %415 = vmatprep.subr.mxu0 0.0
        %416 = vmatpush1.msra.mxu0 0.0
        %417 = vmatprep.subr.mxu0 0.0
        %418 = vmatpush1.msra.mxu0 0.0
        %419 = vmatprep.subr.mxu0 0.0
        %420 = vmatpush1.msra.mxu0 0.0
        %421 = vmatprep.subr.mxu0 0.0
        %422 = vmatpush1.msra.mxu0 0.0
        %423 = vmatprep.mubr.f32.mxu0 0.0
        %424 = vmatmul.mubr.f32.gmra.mrb[0].mxu0 %v286
        %v425 = vpop.f32.mrb[0].mxu0
        %v426 = vadd.f32 %v282, %v425
        %v427 = vpop.f32.mrb[0].mxu0
        %v428 = vadd.f32 %v282, %v427
        %429 = vdwg.mxu0
        %v430 = vmax.f32 %v355, 0.0
        %v431 = vmax.f32 %v357, 0.0
        %v432 = vmax.f32 %v426, 0.0
        %v433 = vmax.f32 %v428, 0.0
        %v434 = vld [vmem:[%s3] sm:$0xff]
        %v435 = vld [vmem:[%s3 + $0x8] sm:$0x3]
        %v436 = vld [vmem:[%s4] sm:$0xff]
        %v437 = vld [vmem:[%s4 + $0x8] sm:$0x3]
        %439 = vset.pattern.permute.xlu0 0
        %440 = vperm.xlu0 %439, %v436
        %v441 = vpop.permute.xlu0 %440
        %444 = vset.pattern.permute.xlu0 0
        %445 = vperm.xlu0 %444, %v437
        %v446 = vpop.permute.xlu0 %445
        %vm448 = vcmask 64512
        %v450 = vsel %vm448, %v434, 0
        %v453 = vsel %vm448, %v435, 0
        %455 = vmatprep.subr.mxu0 %v431
        %456 = vmatpush1.msra.mxu0 %v430
        %457 = vmatprep.subr.mxu0 0.0
        %458 = vmatpush1.msra.mxu0 0.0
        %459 = vmatprep.subr.mxu0 0.0
        %460 = vmatpush1.msra.mxu0 0.0
        %461 = vmatprep.subr.mxu0 0.0
        %462 = vmatpush1.msra.mxu0 0.0
        %463 = vmatprep.subr.mxu0 0.0
        %464 = vmatpush1.msra.mxu0 0.0
        %465 = vmatprep.subr.mxu0 0.0
        %466 = vmatpush1.msra.mxu0 0.0
        %467 = vmatprep.subr.mxu0 0.0
        %468 = vmatpush1.msra.mxu0 0.0
        %469 = vmatprep.subr.mxu0 0.0
        %470 = vmatpush1.msra.mxu0 0.0
        %471 = vmatprep.subr.mxu0 0.0
        %472 = vmatpush1.msra.mxu0 0.0
        %473 = vmatprep.subr.mxu0 0.0
        %474 = vmatpush1.msra.mxu0 0.0
        %475 = vmatprep.subr.mxu0 0.0
        %476 = vmatpush1.msra.mxu0 0.0
        %477 = vmatprep.subr.mxu0 0.0
        %478 = vmatpush1.msra.mxu0 0.0
        %479 = vmatprep.subr.mxu0 0.0
        %480 = vmatpush1.msra.mxu0 0.0
        %481 = vmatprep.subr.mxu0 0.0
        %482 = vmatpush1.msra.mxu0 0.0
        %483 = vmatprep.subr.mxu0 0.0
        %484 = vmatpush1.msra.mxu0 0.0
        %485 = vmatprep.subr.mxu0 0.0
        %486 = vmatpush1.msra.mxu0 0.0
        %487 = vmatprep.subr.mxu0 0.0
        %488 = vmatpush1.msra.mxu0 0.0
        %489 = vmatprep.subr.mxu0 0.0
        %490 = vmatpush1.msra.mxu0 0.0
        %491 = vmatprep.subr.mxu0 0.0
        %492 = vmatpush1.msra.mxu0 0.0
        %493 = vmatprep.subr.mxu0 0.0
        %494 = vmatpush1.msra.mxu0 0.0
        %495 = vmatprep.subr.mxu0 0.0
        %496 = vmatpush1.msra.mxu0 0.0
        %497 = vmatprep.subr.mxu0 0.0
        %498 = vmatpush1.msra.mxu0 0.0
        %499 = vmatprep.subr.mxu0 0.0
        %500 = vmatpush1.msra.mxu0 0.0
        %501 = vmatprep.subr.mxu0 0.0
        %502 = vmatpush1.msra.mxu0 0.0
        %503 = vmatprep.subr.mxu0 0.0
        %504 = vmatpush1.msra.mxu0 0.0
        %505 = vmatprep.subr.mxu0 0.0
        %506 = vmatpush1.msra.mxu0 0.0
        %507 = vmatprep.subr.mxu0 0.0
        %508 = vmatpush1.msra.mxu0 0.0
        %509 = vmatprep.subr.mxu0 0.0
        %510 = vmatpush1.msra.mxu0 0.0
        %511 = vmatprep.subr.mxu0 0.0
        %512 = vmatpush1.msra.mxu0 0.0
        %513 = vmatprep.subr.mxu0 0.0
        %514 = vmatpush1.msra.mxu0 0.0
        %515 = vmatprep.subr.mxu0 0.0
        %516 = vmatpush1.msra.mxu0 0.0
        %517 = vmatprep.subr.mxu0 0.0
        %518 = vmatpush1.msra.mxu0 0.0
        %519 = vmatprep.mubr.f32.mxu0 0.0
        %520 = vmatmul.mubr.f32.gmra.mrb[0].mxu0 %v450
        %v521 = vpop.f32.mrb[0].mxu0
        %v522 = vadd.f32 %v441, %v521
        %v523 = vpop.f32.mrb[0].mxu0
        %v524 = vadd.f32 %v441, %v523
        %525 = vmatprep.mubr.f32.mxu0 0.0
        %526 = vmatmul.mubr.f32.gmra.mrb[0].mxu0 %v453
        %v527 = vpop.f32.mrb[0].mxu0
        %v528 = vadd.f32 %v446, %v527
        %v529 = vpop.f32.mrb[0].mxu0
        %v530 = vadd.f32 %v446, %v529
        %531 = vdwg.mxu0
        %532 = vmatprep.subr.mxu0 %v433
        %533 = vmatpush1.msra.mxu0 %v432
        %534 = vmatprep.subr.mxu0 0.0
        %535 = vmatpush1.msra.mxu0 0.0
        %536 = vmatprep.subr.mxu0 0.0
        %537 = vmatpush1.msra.mxu0 0.0
        %538 = vmatprep.subr.mxu0 0.0
        %539 = vmatpush1.msra.mxu0 0.0
        %540 = vmatprep.subr.mxu0 0.0
        %541 = vmatpush1.msra.mxu0 0.0
        %542 = vmatprep.subr.mxu0 0.0
        %543 = vmatpush1.msra.mxu0 0.0
        %544 = vmatprep.subr.mxu0 0.0
        %545 = vmatpush1.msra.mxu0 0.0
        %546 = vmatprep.subr.mxu0 0.0
        %547 = vmatpush1.msra.mxu0 0.0
        %548 = vmatprep.subr.mxu0 0.0
        %549 = vmatpush1.msra.mxu0 0.0
        %550 = vmatprep.subr.mxu0 0.0
        %551 = vmatpush1.msra.mxu0 0.0
        %552 = vmatprep.subr.mxu0 0.0
        %553 = vmatpush1.msra.mxu0 0.0
        %554 = vmatprep.subr.mxu0 0.0
        %555 = vmatpush1.msra.mxu0 0.0
        %556 = vmatprep.subr.mxu0 0.0
        %557 = vmatpush1.msra.mxu0 0.0
        %558 = vmatprep.subr.mxu0 0.0
        %559 = vmatpush1.msra.mxu0 0.0
        %560 = vmatprep.subr.mxu0 0.0
        %561 = vmatpush1.msra.mxu0 0.0
        %562 = vmatprep.subr.mxu0 0.0
        %563 = vmatpush1.msra.mxu0 0.0
        %564 = vmatprep.subr.mxu0 0.0
        %565 = vmatpush1.msra.mxu0 0.0
        %566 = vmatprep.subr.mxu0 0.0
        %567 = vmatpush1.msra.mxu0 0.0
        %568 = vmatprep.subr.mxu0 0.0
        %569 = vmatpush1.msra.mxu0 0.0
        %570 = vmatprep.subr.mxu0 0.0
        %571 = vmatpush1.msra.mxu0 0.0
        %572 = vmatprep.subr.mxu0 0.0
        %573 = vmatpush1.msra.mxu0 0.0
        %574 = vmatprep.subr.mxu0 0.0
        %575 = vmatpush1.msra.mxu0 0.0
        %576 = vmatprep.subr.mxu0 0.0
        %577 = vmatpush1.msra.mxu0 0.0
        %578 = vmatprep.subr.mxu0 0.0
        %579 = vmatpush1.msra.mxu0 0.0
        %580 = vmatprep.subr.mxu0 0.0
        %581 = vmatpush1.msra.mxu0 0.0
        %582 = vmatprep.subr.mxu0 0.0
        %583 = vmatpush1.msra.mxu0 0.0
        %584 = vmatprep.subr.mxu0 0.0
        %585 = vmatpush1.msra.mxu0 0.0
        %586 = vmatprep.subr.mxu0 0.0
        %587 = vmatpush1.msra.mxu0 0.0
        %588 = vmatprep.subr.mxu0 0.0
        %589 = vmatpush1.msra.mxu0 0.0
        %590 = vmatprep.subr.mxu0 0.0
        %591 = vmatpush1.msra.mxu0 0.0
        %592 = vmatprep.subr.mxu0 0.0
        %593 = vmatpush1.msra.mxu0 0.0
        %594 = vmatprep.subr.mxu0 0.0
        %595 = vmatpush1.msra.mxu0 0.0
        %596 = vmatprep.mubr.f32.mxu0 0.0
        %597 = vmatmul.mubr.f32.gmra.mrb[0].mxu0 %v450
        %v598 = vpop.f32.mrb[0].mxu0
        %v599 = vadd.f32 %v441, %v598
        %v600 = vpop.f32.mrb[0].mxu0
        %v601 = vadd.f32 %v441, %v600
        %602 = vmatprep.mubr.f32.mxu0 0.0
        %603 = vmatmul.mubr.f32.gmra.mrb[0].mxu0 %v453
        %v604 = vpop.f32.mrb[0].mxu0
        %v605 = vadd.f32 %v446, %v604
        %v606 = vpop.f32.mrb[0].mxu0
        %v607 = vadd.f32 %v446, %v606
        %608 = vdwg.mxu0
        %609 = vst [vmem:[%s242] sm:$0xff] %v522
        %610 = vst [vmem:[%s242 + $0x8] sm:$0xff] %v524
        %611 = vst [vmem:[%s242 + $0x10] sm:$0xff] %v599
        %612 = vst [vmem:[%s242 + $0x18] sm:$0xff] %v601
        %613 = vst [vmem:[%s242 + $0x20] sm:$0x3] %v528
        %614 = vst [vmem:[%s242 + $0x28] sm:$0x3] %v530
        %615 = vst [vmem:[%s242 + $0x30] sm:$0x3] %v605
        %616 = vst [vmem:[%s242 + $0x38] sm:$0x3] %v607
        %s617 = sand.u32 %s140, 1
        %s618 = scalar_lea.sflag [#allocation4], %s617
        %s619 = sand.u32 %s140, 1
        %s620 = smul.addr %s619, 64
        %s621 = scalar_lea.vmem [#allocation5], %s620
        // Predicated region
        $region45: #{tpu_custom_call.1} parent=39 // pred_check
          %p622 = pneg %p150
        $region46: #{tpu_custom_call.1} parent=39 // pred_check_branch
          %624 = sbr.rel (%p622) target = $region48
        $region47: #{tpu_custom_call.1} parent=39 // pred_region
          %s625 = smul.u32 4, %s22
          %s627 = ssub.s32 1024, 1024
          %628 = vsyncadd %s618, %s627
          %s629 = smul.addr %s625, 128
          %s630 = scalar_lea.hbm %s5, %s629
          %s631 = sshll.u32 %s621, 4
          %s632 = int_to_ptr.vmem [resolvable:$true] %s631
          %637 = dma.vmem_to_hbm [thread:$0]  %s632, 1024, %s630, %s618, 512, 1024, 32
        $region48: #{tpu_custom_call.1} parent=39 // pred_fallthru
          _
      $region40: #{tpu_custom_call.1} parent=5 // pred_fallthru
        _
      %p638 = scmp.le.s32.totalorder 2, %s17
      // Predicated region
      $region49: #{tpu_custom_call.1} parent=5 // pred_check
        %p639 = pneg %p638
      $region50: #{tpu_custom_call.1} parent=5 // pred_check_branch
        %641 = sbr.rel (%p639) target = $region52
      $region51: #{tpu_custom_call.1} parent=5 // pred_region
        %s642 = ssub.s32 %s17, 2
        // Predicated region
        $region53: #{tpu_custom_call.1} parent=51 // pred_check
          %p643 = pneg %p156
        $region54: #{tpu_custom_call.1} parent=51 // pred_check_branch
          %645 = sbr.rel (%p643) target = $region56
        $region55: #{tpu_custom_call.1} parent=51 // pred_region
          %s646 = sand.u32 %s141, 1
          %s647 = scalar_lea.sflag [#allocation4], %s646
          %s648 = sand.u32 %s141, 1
          %s649 = smul.addr %s648, 64
          %s650 = scalar_lea.vmem [#allocation5], %s649
          %651 = dma.done %s647, 1024
        $region56: #{tpu_custom_call.1} parent=51 // pred_fallthru
          _
      $region52: #{tpu_custom_call.1} parent=5 // pred_fallthru
        _
    $region6: #{tpu_custom_call.1} parent=1 // loop_footer
      %s21 = sadd.s32 1, %s17
    $region7: #{tpu_custom_call.1} parent=1 // loop_footer_branch
      %16 = sbr.rel target = $region3
    $region8: #{tpu_custom_call.1} parent=1 // loop_exit
      _
    %652 = vsyncpa [#allocation3], 1
    %s653 = scalar_lea.sflag [#allocation3], 1
    %654 = vsyncpa %s653, 1
    %655 = vsyncpa [#allocation4], 1
    %s656 = scalar_lea.sflag [#allocation4], 1
    %657 = vsyncpa %s656, 1

</llo_original>
